<compile_context>
chip_gen: v7x
topology: tpu7x:2x2x1
jax: 0.10.0
libtpu: 0.0.40
codegen_flags: <defaults>
</compile_context>

<pallas_src>
import jax
import jax.numpy as jnp
from jax.experimental import pallas as pl
from jax.experimental.pallas import tpu as pltpu


H_MAX = 1024


# ----------------------------------------------------------------------------
# Parameter construction (== RoPE.__init__ / get_rota_matrix), plain JAX glue.
# ----------------------------------------------------------------------------
def make_rope_tables(inchannels: int, h_max: int = H_MAX):
    """Compact per-channel cos / signed-sin tables, each of shape (C, h_max)."""
    C = inchannels
    c = jnp.arange(C)
    theta = 10000.0 ** (-2.0 * (c // 2).astype(jnp.float32) / C)       # (C,)
    pos = jnp.arange(h_max, dtype=jnp.float32)                         # (P,)
    ang = theta[:, None] * pos[None, :]                                # (C, P)
    cos_t = jnp.cos(ang)                                               # (C, P)
    sign = jnp.where(c % 2 == 0, -1.0, 1.0)[:, None]                   # -(-1)^c
    sin_t = sign * jnp.sin(ang)                                        # (C, P)
    return cos_t, sin_t


def make_rota_matrix(inchannels: int, h_max: int = H_MAX) -> jnp.ndarray:
    """Full (h_max, C, C) rotation matrices — used only for the reference check."""
    C = inchannels
    i = jnp.arange(C) // 2
    theta_i = 10000.0 ** (-2.0 * i.astype(jnp.float32) / C)
    pos = jnp.arange(h_max, dtype=jnp.float32)[:, None]
    angles = theta_i[None, :] * pos
    cos_v = jnp.cos(angles)
    pn = ((-1) ** jnp.arange(C)).astype(jnp.float32)
    sin_v = jnp.sin(angles) * pn[None, :]

    c_idx = jnp.arange(C)
    sin_pos = c_idx + (-1) ** c_idx

    rota = jnp.zeros((h_max, C, C), jnp.float32)
    rota = rota.at[:, c_idx, c_idx].set(cos_v)
    rota = rota.at[:, sin_pos, c_idx].set(sin_v)
    return rota


# ----------------------------------------------------------------------------
# Pallas kernel
# ----------------------------------------------------------------------------
def _rope_kernel(cos_ref, sin_ref, x_ref, o_ref):
    # cos_ref / sin_ref : (C, TP, 1) for 'row'  or (C, 1, TP) for 'col'
    #                     (already shaped for a native lane-/sublane-broadcast)
    # x_ref / o_ref     : (C, TP, W) for 'row'  or (C, H, TP) for 'col'
    x = x_ref[...]
    c, d1, d2 = x.shape
    # Swap adjacent channel pairs: (x0,x1,x2,x3,...) -> (x1,x0,x3,x2,...).
    # All reshapes/slices act on leading dims only (above the (sublane, lane)
    # tile), i.e. pure vreg re-indexing on the VPU path, no MXU/XLU work.
    xr = x.reshape(c // 2, 2, d1, d2)
    x_swap = jnp.concatenate([xr[:, 1:2], xr[:, 0:1]], axis=1).reshape(c, d1, d2)
    out = cos_ref[...] * x + sin_ref[...] * x_swap
    o_ref[...] = out.astype(o_ref.dtype)


def _pick_pos_tile(P: int, bytes_per_pos: int, quantum: int,
                   budget_bytes: int = 2 << 20) -> int:
    """Largest position tile keeping one feature block under ~budget_bytes.

    The tile must either equal the full extent P or be a multiple of `quantum`
    (8 when positions sit on the sublane axis, 128 when they sit on lanes) so
    both the feature block and the cos/sin table block satisfy the TPU (8,128)
    block-shape constraint.  ~2 MiB blocks * (in + out) * double-buffering stays
    well inside the scoped-VMEM defaults on v5e/v6e/v7x.
    """
    if P * bytes_per_pos <= budget_bytes:
        return P
    t = (budget_bytes // bytes_per_pos) // quantum * quantum
    t = max(t, quantum)
    return min(t, P)


def rope_forward(feats: jnp.ndarray, cos_t: jnp.ndarray, sin_t: jnp.ndarray,
                 line_type: str) -> jnp.ndarray:
    """feats: (B, C, H, W) NCHW.  Returns (B, C, H, W) == einsum '...->bvhw'."""
    B, C, H, W = feats.shape
    assert C % 2 == 0, "RoPE needs an even channel count"
    itemsize = jnp.dtype(feats.dtype).itemsize

    if line_type == "row":
        P = H
        # Rotated positions live on the sublane axis of the feature block.
        TP = _pick_pos_tile(P, C * W * itemsize, quantum=8)
        x_spec = pl.BlockSpec((pl.Squeezed(), C, TP, W), lambda p, b: (b, 0, p, 0))
        out_spec = pl.BlockSpec((pl.Squeezed(), C, TP, W), lambda p, b: (b, 0, p, 0))
        tab_spec = pl.BlockSpec((C, TP, 1), lambda p, b: (0, p, 0))
        cos = cos_t[:, :P].reshape(C, P, 1)
        sin = sin_t[:, :P].reshape(C, P, 1)
    else:
        P = W
        # Rotated positions live on the lane axis of the feature block.
        TP = _pick_pos_tile(P, C * H * itemsize, quantum=128)
        x_spec = pl.BlockSpec((pl.Squeezed(), C, H, TP), lambda p, b: (b, 0, 0, p))
        out_spec = pl.BlockSpec((pl.Squeezed(), C, H, TP), lambda p, b: (b, 0, 0, p))
        tab_spec = pl.BlockSpec((C, 1, TP), lambda p, b: (0, 0, p))
        cos = cos_t[:, :P].reshape(C, 1, P)
        sin = sin_t[:, :P].reshape(C, 1, P)

    assert P <= cos_t.shape[1], "spatial extent exceeds H_MAX"

    return pl.pallas_call(
        _rope_kernel,
        out_shape=jax.ShapeDtypeStruct((B, C, H, W), feats.dtype),
        # B innermost: the cos/sin blocks keep the same block index across the
        # inner axis, so Pallas skips their re-DMA between batches.
        grid=(pl.cdiv(P, TP), B),
        in_specs=[tab_spec, tab_spec, x_spec],
        out_specs=out_spec,
        compiler_params=pltpu.CompilerParams(
            dimension_semantics=("parallel", "parallel"),
            vmem_limit_bytes=32 * 1024 * 1024,
        ),
    )(cos, sin, feats)


# ----------------------------------------------------------------------------
# Reference (original einsum semantics) + self-check
# ----------------------------------------------------------------------------
def rope_reference(feats, rota_matrix, line_type):
    if line_type == "row":
        r = rota_matrix[: feats.shape[2]]
        return jnp.einsum("hvc,bchw->bvhw", r, feats)
    else:
        r = rota_matrix[: feats.shape[3]]
        return jnp.einsum("wvc,bchw->bvhw", r, feats)


if __name__ == "__main__":
    B, C, H, W = 2, 4, 16, 16
    key = jax.random.PRNGKey(0)
    feats = jax.random.normal(key, (B, C, H, W), dtype=jnp.float32)

    cos_t, sin_t = make_rope_tables(C)      # kernel "parameters"
    rota_matrix = make_rota_matrix(C)       # reference-only matrices

    ok = True
    for line_type in ("row", "col"):
        out = rope_forward(feats, cos_t, sin_t, line_type)
        out = jax.block_until_ready(out)
        ref = rope_reference(feats, rota_matrix, line_type)
        ok = ok and bool(jnp.allclose(out, ref, atol=1e-5, rtol=1e-5))
        assert out.shape == (B, C, H, W)

    if ok:
        print("KERNEL_OK")
    else:
        print("KERNEL_MISMATCH")
</pallas_src>

<mosaic_0001>
module attributes {stable_mosaic.version = 11 : i64} {
  func.func @_rope_kernel(%arg0: i32, %arg1: i32, %arg2: memref<4x16x1xf32, #tpu.memory_space<vmem>>, %arg3: memref<4x16x1xf32, #tpu.memory_space<vmem>>, %arg4: memref<1x4x16x16xf32, #tpu.memory_space<vmem>>, %arg5: memref<1x4x16x16xf32, #tpu.memory_space<vmem>>) attributes {dimension_semantics = [#tpu.dimension_semantics<parallel>, #tpu.dimension_semantics<parallel>], iteration_bounds = array<i64: 1, 2>, scalar_prefetch = 0 : i64, scratch_operands = 0 : i64, tpu.core_type = #tpu.core_type<tc>, window_params = [{transform_indices = @transform_0, window_bounds = array<i64: 4, 16, 1>}, {transform_indices = @transform_1, window_bounds = array<i64: 4, 16, 1>}, {transform_indices = @transform_2, window_bounds = array<i64: 1, 4, 16, 16>}, {transform_indices = @transform_3, window_bounds = array<i64: 1, 4, 16, 16>}]} {
    %c0 = arith.constant 0 : index
    %c0_0 = arith.constant 0 : index
    %c0_1 = arith.constant 0 : index
    %c0_2 = arith.constant 0 : index
    %0 = vector.load %arg4[%c0, %c0_0, %c0_1, %c0_2] : memref<1x4x16x16xf32, #tpu.memory_space<vmem>>, vector<1x4x16x16xf32>
    %1 = vector.shape_cast %0 : vector<1x4x16x16xf32> to vector<4x16x16xf32>
    %2 = vector.shape_cast %1 : vector<4x16x16xf32> to vector<2x2x16x16xf32>
    %3 = vector.extract_strided_slice %2 {offsets = [0, 1, 0, 0], sizes = [2, 1, 16, 16], strides = [1, 1, 1, 1]} : vector<2x2x16x16xf32> to vector<2x1x16x16xf32>
    %4 = vector.extract_strided_slice %2 {offsets = [0, 0, 0, 0], sizes = [2, 1, 16, 16], strides = [1, 1, 1, 1]} : vector<2x2x16x16xf32> to vector<2x1x16x16xf32>
    %5 = tpu.concatenate %3, %4 in 1 : vector<2x1x16x16xf32>, vector<2x1x16x16xf32> -> vector<2x2x16x16xf32>
    %6 = vector.shape_cast %5 : vector<2x2x16x16xf32> to vector<4x16x16xf32>
    %c0_3 = arith.constant 0 : index
    %c0_4 = arith.constant 0 : index
    %c0_5 = arith.constant 0 : index
    %7 = vector.load %arg2[%c0_3, %c0_4, %c0_5] : memref<4x16x1xf32, #tpu.memory_space<vmem>>, vector<4x16x1xf32>
    %8 = vector.broadcast %7 : vector<4x16x1xf32> to vector<4x16x16xf32>
    %9 = arith.mulf %8, %1 : vector<4x16x16xf32>
    %c0_6 = arith.constant 0 : index
    %c0_7 = arith.constant 0 : index
    %c0_8 = arith.constant 0 : index
    %10 = vector.load %arg3[%c0_6, %c0_7, %c0_8] : memref<4x16x1xf32, #tpu.memory_space<vmem>>, vector<4x16x1xf32>
    %11 = vector.broadcast %10 : vector<4x16x1xf32> to vector<4x16x16xf32>
    %12 = arith.mulf %11, %6 : vector<4x16x16xf32>
    %13 = arith.addf %9, %12 : vector<4x16x16xf32>
    %c0_9 = arith.constant 0 : index
    %c0_10 = arith.constant 0 : index
    %c0_11 = arith.constant 0 : index
    %c0_12 = arith.constant 0 : index
    %14 = vector.load %arg5[%c0_9, %c0_10, %c0_11, %c0_12] : memref<1x4x16x16xf32, #tpu.memory_space<vmem>>, vector<1x4x16x16xf32>
    %15 = vector.shape_cast %14 : vector<1x4x16x16xf32> to vector<4x16x16xf32>
    %16 = vector.shape_cast %13 : vector<4x16x16xf32> to vector<1x4x16x16xf32>
    tpu.vector_store %arg5[%c0_9, %c0_10, %c0_11, %c0_12], %16 {strides = array<i32>} : memref<1x4x16x16xf32, #tpu.memory_space<vmem>>, vector<1x4x16x16xf32>,
    return
  }
  func.func @transform_0(%arg0: i32, %arg1: i32) -> (i32, i32, i32) {
    %c0_i32 = arith.constant 0 : i32
    %c0_i32_0 = arith.constant 0 : i32
    %c0_i32_1 = arith.constant 0 : i32
    return %c0_i32, %arg0, %c0_i32_0 : i32, i32, i32
  }
  func.func @transform_1(%arg0: i32, %arg1: i32) -> (i32, i32, i32) {
    %c0_i32 = arith.constant 0 : i32
    %c0_i32_0 = arith.constant 0 : i32
    %c0_i32_1 = arith.constant 0 : i32
    return %c0_i32, %arg0, %c0_i32_0 : i32, i32, i32
  }
  func.func @transform_2(%arg0: i32, %arg1: i32) -> (i32, i32, i32, i32) {
    %c0_i32 = arith.constant 0 : i32
    %c0_i32_0 = arith.constant 0 : i32
    %c0_i32_1 = arith.constant 0 : i32
    return %arg1, %c0_i32, %arg0, %c0_i32_0 : i32, i32, i32, i32
  }
  func.func @transform_3(%arg0: i32, %arg1: i32) -> (i32, i32, i32, i32) {
    %c0_i32 = arith.constant 0 : i32
    %c0_i32_0 = arith.constant 0 : i32
    %c0_i32_1 = arith.constant 0 : i32
    return %arg1, %c0_i32, %arg0, %c0_i32_0 : i32, i32, i32, i32
  }
}

</mosaic_0001>

<llo_original>
// kernel: tpu_custom_call.1
$region0: #{tpu_custom_call.1}
  #allocation0 [shape = 'u32[]', space=smem, size = 0x4, offset = 0x4, fixed_abs, tag = 'smem constant byte address 0x4 - core index']
  #allocation1 [shape = 'u32[144,128]{1,0:T(1,128)}', space=vmem, size = 0x12000, scoped, tag = 'internal scratch']
  %s0 = inlined_call_operand.vmem [shape: f32[4,16,1], index: 0, kind: input, shape index: {}]
  %s1 = inlined_call_operand.vmem [shape: f32[4,16,1], index: 1, kind: input, shape index: {}]
  %s2 = inlined_call_operand.vmem [shape: f32[2,4,16,16], index: 2, kind: input, shape index: {}]
  %s3 = inlined_call_operand.hbm [shape: f32[2,4,16,16], index: 3, kind: output, shape index: {}]
  %s4 = sld [smem:[#allocation0]]
  $region45: #{tpu_custom_call.1} parent=0
    _
  %s6 = ssub.s32 1, %s4
  %s7 = scalar_select 0, %s6, %s4
  $region1: #{tpu_custom_call.1} parent=0
    #allocation2 [shape = 'u8[65536]{0}', space=vmem, size = 0x10000, scoped, tag = 'output window, operand 0']
    #allocation3 [shape = 's32[2]{0}', space=sflag, size = 0x8, scoped, tag = 'scoped memory for tpu_custom_call.1']
    %8 = vsyncpa [#allocation3], 0
    %s9 = scalar_lea.sflag [#allocation3], 1
    %10 = vsyncpa %s9, 0
    loop: start=0, step=1, limit=4
    $region2: #{tpu_custom_call.1} parent=1 // loop_pre_header
      _
    $region3: #{tpu_custom_call.1} parent=1 // loop_header
      %s12 = sphi 0, %s16
      %p13 = scmp.ge.s32.totalorder %s12, 4
      %s19 = sphi 0, %s31
      %s20 = sphi 0, %s27
      %s21 = sphi 0, %s19
      %s22 = sphi 0, %s20
      %s23 = sphi 0, %s21
      %s24 = sphi 0, %s22
      %s34 = sphi 0, %s36
      %s37 = sphi 0, %s34
      %s38 = sphi 0, %s37
      %s54 = sphi 0, %s38
      %s60 = sphi 0, %s62
      %s63 = sphi 0, %s60
      %s64 = sphi 0, %s63
      %s80 = sphi 0, %s64
      %s88 = sphi 0, %s90
      %s91 = sphi 0, %s88
      %s92 = sphi 0, %s91
      %s108 = sphi 0, %s92
      %s116 = sphi 0, %s118
      %s119 = sphi 0, %s116
      %s120 = sphi 0, %s119
      %s136 = sphi 0, %s120
    $region4: #{tpu_custom_call.1} parent=1 // loop_header_branch
      %15 = sbr.rel (%p13) target = $region8
    $region5: #{tpu_custom_call.1} parent=1 // loop_body
      %s17 = ssub.s32 %s12, 1
      %s18 = ssub.s32 %s12, 2
      %s25 = sadd.s32 1, %s20
      %p26 = scmp.ge.s32.totalorder %s25, 2
      %s27 = scalar_select %p26, 0, %s25
      %s28 = sadd.s32 1, %s19
      %s29 = scalar_select %p26, %s28, %s19
      %p30 = scmp.ge.s32.totalorder %s29, 1
      %s31 = scalar_select %p30, 0, %s29
      %s32 = ssub.s32 %s19, %s31
      %p33 = scmp.eq.s32.totalorder %s32, 0
      %s35 = sadd.s32 %s34, 1
      %s36 = scalar_select %p33, %s34, %s35
      %p39 = pneg %p33
      %p40 = scmp.eq.s32.totalorder %s12, 1
      %p41 = por %p39, %p40
      %p42 = scmp.ne.s32.totalorder %s34, %s37
      %p43 = scmp.eq.s32.totalorder %s12, 0
      %p44 = por %p42, %p43
      %p45 = scmp.ne.s32.totalorder %s34, %s37
      %p46 = scmp.eq.s32.totalorder %s17, 1
      %p47 = por %p45, %p46
      %p48 = scmp.ne.s32.totalorder %s37, %s38
      %p49 = scmp.eq.s32.totalorder %s17, 0
      %p50 = por %p48, %p49
      %p51 = scmp.ne.s32.totalorder %s37, %s38
      %p52 = scmp.eq.s32.totalorder %s18, 1
      %p53 = por %p51, %p52
      %p55 = scmp.ne.s32.totalorder %s38, %s54
      %p56 = scmp.eq.s32.totalorder %s18, 0
      %p57 = por %p55, %p56
      %s58 = ssub.s32 %s19, %s31
      %p59 = scmp.eq.s32.totalorder %s58, 0
      %s61 = sadd.s32 %s60, 1
      %s62 = scalar_select %p59, %s60, %s61
      %p65 = pneg %p59
      %p66 = scmp.eq.s32.totalorder %s12, 1
      %p67 = por %p65, %p66
      %p68 = scmp.ne.s32.totalorder %s60, %s63
      %p69 = scmp.eq.s32.totalorder %s12, 0
      %p70 = por %p68, %p69
      %p71 = scmp.ne.s32.totalorder %s60, %s63
      %p72 = scmp.eq.s32.totalorder %s17, 1
      %p73 = por %p71, %p72
      %p74 = scmp.ne.s32.totalorder %s63, %s64
      %p75 = scmp.eq.s32.totalorder %s17, 0
      %p76 = por %p74, %p75
      %p77 = scmp.ne.s32.totalorder %s63, %s64
      %p78 = scmp.eq.s32.totalorder %s18, 1
      %p79 = por %p77, %p78
      %p81 = scmp.ne.s32.totalorder %s64, %s80
      %p82 = scmp.eq.s32.totalorder %s18, 0
      %p83 = por %p81, %p82
      %s84 = ssub.s32 %s20, %s27
      %s85 = ssub.s32 %s19, %s31
      %s86 = sor.u32 %s84, %s85
      %p87 = scmp.eq.s32.totalorder %s86, 0
      %s89 = sadd.s32 %s88, 1
      %s90 = scalar_select %p87, %s88, %s89
      %p93 = pneg %p87
      %p94 = scmp.eq.s32.totalorder %s12, 1
      %p95 = por %p93, %p94
      %p96 = scmp.ne.s32.totalorder %s88, %s91
      %p97 = scmp.eq.s32.totalorder %s12, 0
      %p98 = por %p96, %p97
      %p99 = scmp.ne.s32.totalorder %s88, %s91
      %p100 = scmp.eq.s32.totalorder %s17, 1
      %p101 = por %p99, %p100
      %p102 = scmp.ne.s32.totalorder %s91, %s92
      %p103 = scmp.eq.s32.totalorder %s17, 0
      %p104 = por %p102, %p103
      %p105 = scmp.ne.s32.totalorder %s91, %s92
      %p106 = scmp.eq.s32.totalorder %s18, 1
      %p107 = por %p105, %p106
      %p109 = scmp.ne.s32.totalorder %s92, %s108
      %p110 = scmp.eq.s32.totalorder %s18, 0
      %p111 = por %p109, %p110
      %s112 = ssub.s32 %s20, %s27
      %s113 = ssub.s32 %s19, %s31
      %s114 = sor.u32 %s112, %s113
      %p115 = scmp.eq.s32.totalorder %s114, 0
      %s117 = sadd.s32 %s116, 1
      %s118 = scalar_select %p115, %s116, %s117
      %p121 = pneg %p115
      %p122 = scmp.eq.s32.totalorder %s12, 1
      %p123 = por %p121, %p122
      %p124 = scmp.ne.s32.totalorder %s116, %s119
      %p125 = scmp.eq.s32.totalorder %s12, 0
      %p126 = por %p124, %p125
      %p127 = scmp.ne.s32.totalorder %s116, %s119
      %p128 = scmp.eq.s32.totalorder %s17, 1
      %p129 = por %p127, %p128
      %p130 = scmp.ne.s32.totalorder %s119, %s120
      %p131 = scmp.eq.s32.totalorder %s17, 0
      %p132 = por %p130, %p131
      %p133 = scmp.ne.s32.totalorder %s119, %s120
      %p134 = scmp.eq.s32.totalorder %s18, 1
      %p135 = por %p133, %p134
      %p137 = scmp.ne.s32.totalorder %s120, %s136
      %p138 = scmp.eq.s32.totalorder %s18, 0
      %p139 = por %p137, %p138
      %p140 = scmp.le.s32.totalorder 1, %s12
      %p141 = scmp.lt.s32.totalorder %s12, 3
      %p142 = pnand %p140, %p141
      %p143 = pneg %p142
      // Predicated region
      $region9: #{tpu_custom_call.1} parent=5 // pred_check
        _
      $region10: #{tpu_custom_call.1} parent=5 // pred_check_branch
        %145 = sbr.rel (%p142) target = $region12
      $region11: #{tpu_custom_call.1} parent=5 // pred_region
        %s146 = ssub.s32 %s12, 1
        // Predicated region
        $region13: #{tpu_custom_call.1} parent=11 // pred_check
          %p147 = pneg %p50
        $region14: #{tpu_custom_call.1} parent=11 // pred_check_branch
          %149 = sbr.rel (%p147) target = $region16
        $region15: #{tpu_custom_call.1} parent=11 // pred_region
          %s150 = smul.u32 2, %s21
          %p151 = scmp.lt.s32.totalorder %s150, 1
          %s152 = scalar_select %p151, %s150, 1
          %s153 = smul.addr %s152, 8
          %s154 = scalar_lea.vmem %s0, %s153
          %s155 = smul.u32 2, %s21
        $region16: #{tpu_custom_call.1} parent=11 // pred_fallthru
          _
        // Predicated region
        $region17: #{tpu_custom_call.1} parent=11 // pred_check
          %p156 = pneg %p76
        $region18: #{tpu_custom_call.1} parent=11 // pred_check_branch
          %158 = sbr.rel (%p156) target = $region20
        $region19: #{tpu_custom_call.1} parent=11 // pred_region
          %s159 = smul.u32 2, %s21
          %p160 = scmp.lt.s32.totalorder %s159, 1
          %s161 = scalar_select %p160, %s159, 1
          %s162 = smul.addr %s161, 8
          %s163 = scalar_lea.vmem %s1, %s162
          %s164 = smul.u32 2, %s21
        $region20: #{tpu_custom_call.1} parent=11 // pred_fallthru
          _
      $region12: #{tpu_custom_call.1} parent=5 // pred_fallthru
        _
      %p165 = scmp.lt.s32.totalorder %s12, 2
      // Predicated region
      $region21: #{tpu_custom_call.1} parent=5 // pred_check
        %p166 = pneg %p165
      $region22: #{tpu_custom_call.1} parent=5 // pred_check_branch
        %168 = sbr.rel (%p166) target = $region24
      $region23: #{tpu_custom_call.1} parent=5 // pred_region
        // Predicated region
        $region25: #{tpu_custom_call.1} parent=23 // pred_check
          %p169 = pneg %p98
        $region26: #{tpu_custom_call.1} parent=23 // pred_check_branch
          %171 = sbr.rel (%p169) target = $region28
        $region27: #{tpu_custom_call.1} parent=23 // pred_region
          %s172 = smul.u32 2, %s19
          %p173 = scmp.lt.s32.totalorder %s20, 1
          %s174 = scalar_select %p173, %s20, 1
          %p175 = scmp.lt.s32.totalorder %s172, 1
          %s176 = scalar_select %p175, %s172, 1
          %s177 = smul.addr %s174, 8
          %s178 = sadd.s32 %s176, %s177
          %s179 = smul.addr %s178, 8
          %s180 = scalar_lea.vmem %s2, %s179
          %s181 = smul.u32 2, %s19
        $region28: #{tpu_custom_call.1} parent=23 // pred_fallthru
          _
      $region24: #{tpu_custom_call.1} parent=5 // pred_fallthru
        _
      %p182 = scmp.le.s32.totalorder 1, %s12
      %p183 = scmp.lt.s32.totalorder %s12, 3
      %p184 = pnand %p182, %p183
      %p185 = pneg %p184
      // Predicated region
      $region29: #{tpu_custom_call.1} parent=5 // pred_check
        _
      $region30: #{tpu_custom_call.1} parent=5 // pred_check_branch
        %187 = sbr.rel (%p184) target = $region32
      $region31: #{tpu_custom_call.1} parent=5 // pred_region
        %s188 = ssub.s32 %s12, 1
        %s189 = smul.u32 2, %s21
        %p190 = scmp.lt.s32.totalorder %s189, 1
        %s191 = scalar_select %p190, %s189, 1
        %s192 = smul.addr %s191, 8
        %s193 = scalar_lea.vmem %s0, %s192
        %p194 = pneg %p50
        %p195 = pneg %p47
        %s196 = smul.u32 2, %s21
        %p197 = scmp.lt.s32.totalorder %s196, 1
        %s198 = scalar_select %p197, %s196, 1
        %s199 = smul.addr %s198, 8
        %s200 = scalar_lea.vmem %s1, %s199
        %p201 = pneg %p76
        %p202 = pneg %p73
        %s203 = smul.u32 2, %s21
        %p204 = scmp.lt.s32.totalorder %s22, 1
        %s205 = scalar_select %p204, %s22, 1
        %p206 = scmp.lt.s32.totalorder %s203, 1
        %s207 = scalar_select %p206, %s203, 1
        %s208 = smul.addr %s205, 8
        %s209 = sadd.s32 %s207, %s208
        %s210 = smul.addr %s209, 8
        %s211 = scalar_lea.vmem %s2, %s210
        %p212 = pneg %p104
        %p213 = pneg %p101
        %p214 = pneg %p132
        %p215 = pneg %p129
        %s216 = sand.u32 %s119, 1
        %s217 = scalar_lea.sflag [#allocation3], %s216
        %s218 = sand.u32 %s119, 1
        %s219 = smul.addr %s218, 64
        %s220 = scalar_lea.vmem [#allocation2], %s219
        %s221 = smul.u32 2, %s21
        %p222 = scmp.lt.s32.totalorder %s221, 1
        %s223 = scalar_select %p222, %s221, 1
        %s224 = smul.addr %s223, 8
        %s225 = scalar_lea.vmem %s0, %s224
        %s226 = smul.u32 2, %s21
        %s227 = smul.u32 2, %s21
        %p228 = scmp.lt.s32.totalorder %s227, 1
        %s229 = scalar_select %p228, %s227, 1
        %s230 = smul.addr %s229, 8
        %s231 = scalar_lea.vmem %s1, %s230
        %s232 = smul.u32 2, %s21
        %s233 = smul.u32 2, %s21
        %p234 = scmp.lt.s32.totalorder %s22, 1
        %s235 = scalar_select %p234, %s22, 1
        %p236 = scmp.lt.s32.totalorder %s233, 1
        %s237 = scalar_select %p236, %s233, 1
        %s238 = smul.addr %s235, 8
        %s239 = sadd.s32 %s237, %s238
        %s240 = smul.addr %s239, 8
        %s241 = scalar_lea.vmem %s2, %s240
        %s242 = smul.u32 2, %s21
        %s243 = smul.u32 2, %s21
        %v244 = vld [vmem:[%s241] sm:$0xff]
        %v245 = vld [vmem:[%s241 + $0x8] sm:$0xff]
        %v246 = vld [vmem:[%s241 + $0x10] sm:$0xff]
        %v247 = vld [vmem:[%s241 + $0x18] sm:$0xff]
        %v248 = vld [vmem:[%s241 + $0x20] sm:$0xff]
        %v249 = vld [vmem:[%s241 + $0x28] sm:$0xff]
        %v250 = vld [vmem:[%s241 + $0x30] sm:$0xff]
        %v251 = vld [vmem:[%s241 + $0x38] sm:$0xff]
        %v252 = vld [vmem:[%s225] sm:$0xff]
        %v253 = vld [vmem:[%s225 + $0x8] sm:$0xff]
        %v254 = vld [vmem:[%s225 + $0x10] sm:$0xff]
        %v255 = vld [vmem:[%s225 + $0x18] sm:$0xff]
        %v256 = vld [vmem:[%s225 + $0x20] sm:$0xff]
        %v257 = vld [vmem:[%s225 + $0x28] sm:$0xff]
        %v258 = vld [vmem:[%s225 + $0x30] sm:$0xff]
        %v259 = vld [vmem:[%s225 + $0x38] sm:$0xff]
        %261 = vset.pattern.permute.xlu0 0
        %262 = vperm.xlu0 %261, %v252
        %v263 = vpop.permute.xlu0 %262
        %266 = vset.pattern.permute.xlu0 0
        %267 = vperm.xlu0 %266, %v253
        %v268 = vpop.permute.xlu0 %267
        %271 = vset.pattern.permute.xlu0 0
        %272 = vperm.xlu0 %271, %v254
        %v273 = vpop.permute.xlu0 %272
        %276 = vset.pattern.permute.xlu0 0
        %277 = vperm.xlu0 %276, %v255
        %v278 = vpop.permute.xlu0 %277
        %281 = vset.pattern.permute.xlu0 0
        %282 = vperm.xlu0 %281, %v256
        %v283 = vpop.permute.xlu0 %282
        %286 = vset.pattern.permute.xlu0 0
        %287 = vperm.xlu0 %286, %v257
        %v288 = vpop.permute.xlu0 %287
        %291 = vset.pattern.permute.xlu0 0
        %292 = vperm.xlu0 %291, %v258
        %v293 = vpop.permute.xlu0 %292
        %296 = vset.pattern.permute.xlu0 0
        %297 = vperm.xlu0 %296, %v259
        %v298 = vpop.permute.xlu0 %297
        %v300 = vmul.f32 %v263, %v244
        %v301 = vmul.f32 %v268, %v245
        %v302 = vmul.f32 %v273, %v246
        %v303 = vmul.f32 %v278, %v247
        %v304 = vmul.f32 %v283, %v248
        %v305 = vmul.f32 %v288, %v249
        %v306 = vmul.f32 %v293, %v250
        %v307 = vmul.f32 %v298, %v251
        %v308 = vld [vmem:[%s231] sm:$0xff]
        %v309 = vld [vmem:[%s231 + $0x8] sm:$0xff]
        %v310 = vld [vmem:[%s231 + $0x10] sm:$0xff]
        %v311 = vld [vmem:[%s231 + $0x18] sm:$0xff]
        %v312 = vld [vmem:[%s231 + $0x20] sm:$0xff]
        %v313 = vld [vmem:[%s231 + $0x28] sm:$0xff]
        %v314 = vld [vmem:[%s231 + $0x30] sm:$0xff]
        %v315 = vld [vmem:[%s231 + $0x38] sm:$0xff]
        %317 = vset.pattern.permute.xlu0 0
        %318 = vperm.xlu0 %317, %v308
        %v319 = vpop.permute.xlu0 %318
        %322 = vset.pattern.permute.xlu0 0
        %323 = vperm.xlu0 %322, %v309
        %v324 = vpop.permute.xlu0 %323
        %327 = vset.pattern.permute.xlu0 0
        %328 = vperm.xlu0 %327, %v310
        %v329 = vpop.permute.xlu0 %328
        %332 = vset.pattern.permute.xlu0 0
        %333 = vperm.xlu0 %332, %v311
        %v334 = vpop.permute.xlu0 %333
        %337 = vset.pattern.permute.xlu0 0
        %338 = vperm.xlu0 %337, %v312
        %v339 = vpop.permute.xlu0 %338
        %342 = vset.pattern.permute.xlu0 0
        %343 = vperm.xlu0 %342, %v313
        %v344 = vpop.permute.xlu0 %343
        %347 = vset.pattern.permute.xlu0 0
        %348 = vperm.xlu0 %347, %v314
        %v349 = vpop.permute.xlu0 %348
        %352 = vset.pattern.permute.xlu0 0
        %353 = vperm.xlu0 %352, %v315
        %v354 = vpop.permute.xlu0 %353
        %v356 = vmul.f32 %v319, %v246
        %v357 = vmul.f32 %v324, %v247
        %v358 = vmul.f32 %v329, %v244
        %v359 = vmul.f32 %v334, %v245
        %v360 = vmul.f32 %v339, %v250
        %v361 = vmul.f32 %v344, %v251
        %v362 = vmul.f32 %v349, %v248
        %v363 = vmul.f32 %v354, %v249
        %v364 = vadd.f32 %v300, %v356
        %v365 = vadd.f32 %v301, %v357
        %v366 = vadd.f32 %v302, %v358
        %v367 = vadd.f32 %v303, %v359
        %v368 = vadd.f32 %v304, %v360
        %v369 = vadd.f32 %v305, %v361
        %v370 = vadd.f32 %v306, %v362
        %v371 = vadd.f32 %v307, %v363
        %vm372 = vcmask 130048
        %373 = vst.msk [vmem:[%s220] sm:$0xff] %vm372, %v364
        %374 = vst.msk [vmem:[%s220 + $0x8] sm:$0xff] %vm372, %v365
        %375 = vst.msk [vmem:[%s220 + $0x10] sm:$0xff] %vm372, %v366
        %376 = vst.msk [vmem:[%s220 + $0x18] sm:$0xff] %vm372, %v367
        %377 = vst.msk [vmem:[%s220 + $0x20] sm:$0xff] %vm372, %v368
        %378 = vst.msk [vmem:[%s220 + $0x28] sm:$0xff] %vm372, %v369
        %379 = vst.msk [vmem:[%s220 + $0x30] sm:$0xff] %vm372, %v370
        %380 = vst.msk [vmem:[%s220 + $0x38] sm:$0xff] %vm372, %v371
        %s381 = sand.u32 %s119, 1
        %s382 = scalar_lea.sflag [#allocation3], %s381
        %s383 = sand.u32 %s119, 1
        %s384 = smul.addr %s383, 64
        %s385 = scalar_lea.vmem [#allocation2], %s384
        // Predicated region
        $region33: #{tpu_custom_call.1} parent=31 // pred_check
          %p386 = pneg %p129
        $region34: #{tpu_custom_call.1} parent=31 // pred_check_branch
          %388 = sbr.rel (%p386) target = $region36
        $region35: #{tpu_custom_call.1} parent=31 // pred_region
          %s389 = smul.u32 2, %s21
          %s391 = ssub.s32 1024, 1024
          %392 = vsyncadd %s382, %s391
          %s393 = smul.addr %s22, 8
          %s394 = sadd.s32 %s389, %s393
          %s395 = smul.addr %s394, 128
          %s396 = scalar_lea.hbm %s3, %s395
          %s397 = sshll.u32 %s385, 4
          %s398 = int_to_ptr.vmem [resolvable:$true] %s397
          %403 = dma.vmem_to_hbm [thread:$0]  %s398, 1024, %s396, %s382, 128, 128, 8
        $region36: #{tpu_custom_call.1} parent=31 // pred_fallthru
          _
      $region32: #{tpu_custom_call.1} parent=5 // pred_fallthru
        _
      %p404 = scmp.le.s32.totalorder 2, %s12
      // Predicated region
      $region37: #{tpu_custom_call.1} parent=5 // pred_check
        %p405 = pneg %p404
      $region38: #{tpu_custom_call.1} parent=5 // pred_check_branch
        %407 = sbr.rel (%p405) target = $region40
      $region39: #{tpu_custom_call.1} parent=5 // pred_region
        %s408 = ssub.s32 %s12, 2
        // Predicated region
        $region41: #{tpu_custom_call.1} parent=39 // pred_check
          %p409 = pneg %p135
        $region42: #{tpu_custom_call.1} parent=39 // pred_check_branch
          %411 = sbr.rel (%p409) target = $region44
        $region43: #{tpu_custom_call.1} parent=39 // pred_region
          %s412 = sand.u32 %s120, 1
          %s413 = scalar_lea.sflag [#allocation3], %s412
          %s414 = sand.u32 %s120, 1
          %s415 = smul.addr %s414, 64
          %s416 = scalar_lea.vmem [#allocation2], %s415
          %417 = dma.done %s413, 1024
        $region44: #{tpu_custom_call.1} parent=39 // pred_fallthru
          _
      $region40: #{tpu_custom_call.1} parent=5 // pred_fallthru
        _
    $region6: #{tpu_custom_call.1} parent=1 // loop_footer
      %s16 = sadd.s32 1, %s12
    $region7: #{tpu_custom_call.1} parent=1 // loop_footer_branch
      %11 = sbr.rel target = $region3
    $region8: #{tpu_custom_call.1} parent=1 // loop_exit
      _
    %418 = vsyncpa [#allocation3], 1
    %s419 = scalar_lea.sflag [#allocation3], 1
    %420 = vsyncpa %s419, 1

</llo_original>
